<compile_context>
chip_gen: v7x
topology: tpu7x:2x2x1
jax: 0.10.0
libtpu: 0.0.40
codegen_flags: <defaults>
</compile_context>

<pallas_src>
import functools

import jax
import jax.numpy as jnp
from jax.experimental import pallas as pl
from jax.experimental.pallas import tpu as pltpu


def _round_up(x, m):
    return ((x + m - 1) // m) * m


def _layernorm_kernel_plain(x_ref, a_ref, b_ref, o_ref, *, eps, features):
    # x_ref: (ROW_TILE, F). One-pass stats: the two reductions are independent
    # (overlap on the XLU) and no full-tile f32 `centered` temporary has to
    # stay live across a second reduction.
    x = x_ref[...].astype(jnp.float32)
    sum_x = jnp.sum(x, axis=-1, keepdims=True)               # (R, 1)
    sum_x2 = jnp.sum(x * x, axis=-1, keepdims=True)          # (R, 1)
    mean = sum_x * (1.0 / features)
    # torch.std uses Bessel's correction (divide by N-1).
    var = (sum_x2 - sum_x * mean) * (1.0 / (features - 1))
    var = jnp.maximum(var, 0.0)
    inv = pl.reciprocal(jnp.sqrt(var) + eps, approx=False)   # (R, 1), EUP
    o_ref[...] = (a_ref[...] * ((x - mean) * inv) + b_ref[...]).astype(o_ref.dtype)
    # TODO(synk): for bf16 inputs on v6e/v7x, do this final affine in packed
    # bf16 (keep only the reduction path in f32) to halve VALU work.


def _layernorm_kernel_packed(x_ref, a_ref, b_ref, seg_ref, segt_ref, o_ref, *,
                             eps, features):
    # Lane-dense path for F < 128: g = 128 // F logical rows packed into one
    # lane-row of width W = g*F (=128). Segmented reductions / broadcasts are
    # tiny MXU matmuls against a 0/1 segment matrix, so every vector op and
    # the output store run at full 128-lane width (no masked vst.msk).
    x = x_ref[...].astype(jnp.float32)                       # (R, W)
    seg = seg_ref[...]                                       # (W, GP) 0/1
    segt = segt_ref[...]                                     # (GP, W) 0/1
    sum_x = jnp.dot(x, seg, preferred_element_type=jnp.float32)        # (R, GP)
    sum_x2 = jnp.dot(x * x, seg, preferred_element_type=jnp.float32)   # (R, GP)
    mean = sum_x * (1.0 / features)
    var = (sum_x2 - sum_x * mean) * (1.0 / (features - 1))
    var = jnp.maximum(var, 0.0)
    inv = pl.reciprocal(jnp.sqrt(var) + eps, approx=False)             # (R, GP)
    mean_b = jnp.dot(mean, segt, preferred_element_type=jnp.float32)   # (R, W)
    inv_b = jnp.dot(inv, segt, preferred_element_type=jnp.float32)     # (R, W)
    o_ref[...] = (a_ref[...] * ((x - mean_b) * inv_b) + b_ref[...]).astype(o_ref.dtype)


def _tpu_vmem_bytes():
    try:
        return int(pltpu.get_tpu_info().vmem_capacity_bytes)
    except Exception:
        return 64 << 20   # assume the smallest per-TC VMEM (v7x)


def _choose_row_tile(rows, width, itemsize):
    """Rows per grid step: biggest block under the streamed budget, sublane
    aligned, and small enough to yield >=4 grid steps when rows permit
    (>=2 steps/TensorCore on dual-TC v7x, >=3 for overlap on 1-TC chips)."""
    sublane = {4: 8, 2: 16, 1: 32}.get(itemsize, 8)
    # ~8 MiB of streamed bytes/step: past the measured HBM-roofline knee
    # (~85% at ~4 MiB-class blocks, plateau above) at 1/3 the old VMEM cost.
    block_budget = 8 << 20
    # Per row: (in + out) x double-buffer in the storage dtype, plus the f32
    # working set (x upcast + temporaries) the kernel materializes.
    per_row = 2 * 2 * width * itemsize + 3 * width * 4
    tile = max(sublane, min(block_budget // max(per_row, 1), 2048))
    tile = (tile // sublane) * sublane

    padded_rows = _round_up(rows, sublane)
    tile = min(tile, padded_rows)

    # Force enough grid steps for pipelining / per-core work when rows permit;
    # never split tiny inputs that fit <3 sublane-aligned tiles.
    want_steps = min(4, padded_rows // sublane)
    if want_steps >= 3:
        cap = max(sublane, (padded_rows // want_steps) // sublane * sublane)
        tile = min(tile, cap)
    return tile


def layer_norm(x, a, b, eps=1e-6):
    """LayerNorm over the last axis. x: (..., F); a, b: (F,). Returns x's shape/dtype."""
    orig_shape = x.shape
    features = orig_shape[-1]
    assert features > 1, "unbiased (Bessel) std requires features > 1"

    rows = 1
    for d in orig_shape[:-1]:
        rows *= d
    itemsize = jnp.dtype(x.dtype).itemsize

    x2 = x.reshape(rows, features)
    a_f32 = a.astype(jnp.float32)
    b_f32 = b.astype(jnp.float32)

    # Lane-dense packing for narrow feature dims (F < 128, 128 % F == 0):
    # pack g rows per 128-lane row so stores and vector ops use all lanes.
    pack = features < 128 and (128 % features == 0)
    if pack:
        g = 128 // features
        width = g * features                         # == 128
        rows_p = -(-rows // g)
        if rows_p * g != rows:
            x2 = jnp.pad(x2, ((0, rows_p * g - rows), (0, 0)))
        x2 = x2.reshape(rows_p, width)
        a2 = jnp.tile(a_f32, g).reshape(1, width)
        b2 = jnp.tile(b_f32, g).reshape(1, width)
        gp = _round_up(g, 8)                         # pad segment count to sublane
        col = jax.lax.broadcasted_iota(jnp.int32, (width, gp), 1)
        row_seg = jax.lax.broadcasted_iota(jnp.int32, (width, gp), 0) // features
        seg = (col == row_seg).astype(jnp.float32)   # (width, gp)
        segt = seg.T                                 # (gp, width)
        seg_bytes = 2 * width * gp * 4
    else:
        # TODO(synk): F in (1,128) with 128 % F != 0, and huge F that cannot fit
        # an 8-row block in VMEM, fall back to this plain path (off roofline /
        # would need a feature-chunked two-level grid).
        g, width, rows_p, gp, seg_bytes = 1, features, rows, 0, 0
        a2 = a_f32.reshape(1, width)
        b2 = b_f32.reshape(1, width)

    row_tile = _choose_row_tile(rows_p, width, itemsize)
    padded_rows = _round_up(rows_p, row_tile)
    if padded_rows != rows_p:
        # Padded rows are independent zeros -> var=0 -> inv=1/eps (finite),
        # out=b; sliced off below. No NaN/Inf.
        x2 = jnp.pad(x2, ((0, padded_rows - rows_p), (0, 0)))
    grid_steps = padded_rows // row_tile

    # Triple-buffer the streamed input once there are enough steps to overlap.
    x_spec = pl.BlockSpec((row_tile, width), lambda i: (i, 0))
    if grid_steps >= 3:
        try:
            x_spec = pl.BlockSpec((row_tile, width), lambda i: (i, 0),
                                  pipeline_mode=pl.Buffered(3))
        except TypeError:
            pass  # older jax without pipeline_mode: default double-buffering

    # VMEM accounting: buffered in/out blocks + f32 working set + resident
    # weights/segment matrices + headroom; clamped per generation (<= ~40 MiB
    # on 64-MiB-VMEM v7x, never above 48 MiB anywhere).
    in_block = row_tile * width * itemsize
    n_in_buf = 3 if grid_steps >= 3 else 2
    f32_work = 4 * row_tile * width * 4
    resident = 2 * 2 * width * 4 + seg_bytes
    needed = n_in_buf * in_block + 2 * in_block + f32_work + resident + (4 << 20)
    cap = min(48 << 20, (_tpu_vmem_bytes() * 5) // 8)
    vmem_limit = min(max(needed, 24 << 20), cap)

    if pack:
        kernel = functools.partial(_layernorm_kernel_packed, eps=eps,
                                   features=features)
        in_specs = [
            x_spec,
            pl.BlockSpec((1, width), lambda i: (0, 0)),
            pl.BlockSpec((1, width), lambda i: (0, 0)),
            pl.BlockSpec((width, gp), lambda i: (0, 0)),
            pl.BlockSpec((gp, width), lambda i: (0, 0)),
        ]
        inputs = (x2, a2, b2, seg, segt)
    else:
        kernel = functools.partial(_layernorm_kernel_plain, eps=eps,
                                   features=features)
        in_specs = [
            x_spec,
            pl.BlockSpec((1, width), lambda i: (0, 0)),
            pl.BlockSpec((1, width), lambda i: (0, 0)),
        ]
        inputs = (x2, a2, b2)

    out = pl.pallas_call(
        kernel,
        out_shape=jax.ShapeDtypeStruct((padded_rows, width), x.dtype),
        grid_spec=pltpu.PrefetchScalarGridSpec(
            num_scalar_prefetch=0,
            grid=(grid_steps,),
            in_specs=in_specs,
            out_specs=pl.BlockSpec((row_tile, width), lambda i: (i, 0)),
        ),
        compiler_params=pltpu.CompilerParams(
            # TODO(synk): on v7x verify "parallel" shards the row axis across
            # both TensorCores; switch to pltpu.CORE_PARALLEL if it does not.
            dimension_semantics=("parallel",),
            vmem_limit_bytes=vmem_limit,
        ),
    )(*inputs)

    if pack:
        out = out.reshape(padded_rows * g, features)[:rows]
    else:
        out = out[:rows]
    return out.reshape(orig_shape)


if __name__ == "__main__":
    def reference(x, a, b, eps):
        mean = jnp.mean(x, axis=-1, keepdims=True)
        std = jnp.std(x, axis=-1, keepdims=True, ddof=1)   # unbiased, eps on std
        return a * (x - mean) / (std + eps) + b

    # Shape implied by the module: batch=2, seq=8, hidden=32.
    # Exercises the lane-dense packed path (F < 128).
    key = jax.random.PRNGKey(0)
    B, S, F = 2, 8, 32
    x = jax.random.normal(key, (B, S, F), dtype=jnp.float32)
    a = jnp.ones((F,), dtype=jnp.float32)    # nn.Parameter(torch.ones(features))
    b = jnp.zeros((F,), dtype=jnp.float32)   # nn.Parameter(torch.zeros(features))
    out = jax.block_until_ready(layer_norm(x, a, b, eps=1e-6))
    ref = reference(x, a, b, 1e-6)
    assert jnp.allclose(out, ref, atol=2e-5, rtol=2e-5), "packed-path mismatch"

    # Second (still small) shape exercising the plain wide-F path with a
    # multi-step pipelined grid and non-trivial weights.
    B2, S2, F2 = 4, 64, 256
    x_w = jax.random.normal(jax.random.PRNGKey(1), (B2, S2, F2), dtype=jnp.float32)
    a_w = jax.random.normal(jax.random.PRNGKey(2), (F2,), dtype=jnp.float32)
    b_w = jax.random.normal(jax.random.PRNGKey(3), (F2,), dtype=jnp.float32)
    out_w = jax.block_until_ready(layer_norm(x_w, a_w, b_w, eps=1e-6))
    ref_w = reference(x_w, a_w, b_w, 1e-6)
    assert jnp.allclose(out_w, ref_w, atol=2e-5, rtol=2e-5), "plain-path mismatch"

    print("KERNEL_OK")
</pallas_src>

<mosaic_0001>
module attributes {stable_mosaic.version = 11 : i64} {
  func.func @_layernorm_kernel_packed(%arg0: i32, %arg1: memref<8x128xf32, #tpu.memory_space<vmem>>, %arg2: memref<1x128xf32, #tpu.memory_space<vmem>>, %arg3: memref<1x128xf32, #tpu.memory_space<vmem>>, %arg4: memref<128x8xf32, #tpu.memory_space<vmem>>, %arg5: memref<8x128xf32, #tpu.memory_space<vmem>>, %arg6: memref<8x128xf32, #tpu.memory_space<vmem>>) attributes {dimension_semantics = [#tpu.dimension_semantics<parallel>], iteration_bounds = array<i64: 1>, scalar_prefetch = 0 : i64, scratch_operands = 0 : i64, tpu.core_type = #tpu.core_type<tc>, window_params = [{transform_indices = @transform_0, window_bounds = array<i64: 8, 128>}, {pipeline_mode = #tpu.pipeline_mode<synchronous>, transform_indices = @transform_1, window_bounds = array<i64: 1, 128>}, {pipeline_mode = #tpu.pipeline_mode<synchronous>, transform_indices = @transform_2, window_bounds = array<i64: 1, 128>}, {pipeline_mode = #tpu.pipeline_mode<synchronous>, transform_indices = @transform_3, window_bounds = array<i64: 128, 8>}, {pipeline_mode = #tpu.pipeline_mode<synchronous>, transform_indices = @transform_4, window_bounds = array<i64: 8, 128>}, {transform_indices = @transform_5, window_bounds = array<i64: 8, 128>}]} {
    %c0 = arith.constant 0 : index
    %c0_0 = arith.constant 0 : index
    %0 = vector.load %arg1[%c0, %c0_0] : memref<8x128xf32, #tpu.memory_space<vmem>>, vector<8x128xf32>
    %c0_1 = arith.constant 0 : index
    %c0_2 = arith.constant 0 : index
    %1 = vector.load %arg4[%c0_1, %c0_2] : memref<128x8xf32, #tpu.memory_space<vmem>>, vector<128x8xf32>
    %c0_3 = arith.constant 0 : index
    %c0_4 = arith.constant 0 : index
    %2 = vector.load %arg5[%c0_3, %c0_4] : memref<8x128xf32, #tpu.memory_space<vmem>>, vector<8x128xf32>
    %cst = arith.constant dense<0.000000e+00> : vector<8x8xf32>
    %3 = tpu.matmul %0, %1, %cst {dimension_numbers = #tpu.dot_dimension_numbers<[1], [0], [0], [1], [0, 0, 1, 1], [], []>} : vector<8x128xf32>, vector<128x8xf32>, vector<8x8xf32> -> vector<8x8xf32>
    %4 = arith.mulf %0, %0 : vector<8x128xf32>
    %cst_5 = arith.constant dense<0.000000e+00> : vector<8x8xf32>
    %5 = tpu.matmul %4, %1, %cst_5 {dimension_numbers = #tpu.dot_dimension_numbers<[1], [0], [0], [1], [0, 0, 1, 1], [], []>} : vector<8x128xf32>, vector<128x8xf32>, vector<8x8xf32> -> vector<8x8xf32>
    %cst_6 = arith.constant 3.125000e-02 : f32
    %6 = vector.broadcast %cst_6 : f32 to vector<8x8xf32>
    %7 = arith.mulf %3, %6 : vector<8x8xf32>
    %8 = arith.mulf %3, %7 : vector<8x8xf32>
    %9 = arith.subf %5, %8 : vector<8x8xf32>
    %cst_7 = arith.constant 0.0322580636 : f32
    %10 = vector.broadcast %cst_7 : f32 to vector<8x8xf32>
    %11 = arith.mulf %9, %10 : vector<8x8xf32>
    %cst_8 = arith.constant 0.000000e+00 : f32
    %12 = vector.broadcast %cst_8 : f32 to vector<8x8xf32>
    %13 = arith.maximumf %11, %12 : vector<8x8xf32>
    %14 = math.sqrt %13 : vector<8x8xf32>
    %cst_9 = arith.constant 9.99999997E-7 : f32
    %15 = vector.broadcast %cst_9 : f32 to vector<8x8xf32>
    %16 = arith.addf %14, %15 : vector<8x8xf32>
    %17 = tpu.reciprocal %16 : vector<8x8xf32> -> vector<8x8xf32>
    %cst_10 = arith.constant dense<0.000000e+00> : vector<8x128xf32>
    %18 = tpu.matmul %7, %2, %cst_10 {dimension_numbers = #tpu.dot_dimension_numbers<[1], [0], [0], [1], [0, 0, 1, 1], [], []>} : vector<8x8xf32>, vector<8x128xf32>, vector<8x128xf32> -> vector<8x128xf32>
    %cst_11 = arith.constant dense<0.000000e+00> : vector<8x128xf32>
    %19 = tpu.matmul %17, %2, %cst_11 {dimension_numbers = #tpu.dot_dimension_numbers<[1], [0], [0], [1], [0, 0, 1, 1], [], []>} : vector<8x8xf32>, vector<8x128xf32>, vector<8x128xf32> -> vector<8x128xf32>
    %c0_12 = arith.constant 0 : index
    %c0_13 = arith.constant 0 : index
    %20 = vector.load %arg2[%c0_12, %c0_13] : memref<1x128xf32, #tpu.memory_space<vmem>>, vector<1x128xf32>
    %21 = arith.subf %0, %18 : vector<8x128xf32>
    %22 = arith.mulf %21, %19 : vector<8x128xf32>
    %23 = vector.broadcast %20 : vector<1x128xf32> to vector<8x128xf32>
    %24 = arith.mulf %23, %22 : vector<8x128xf32>
    %c0_14 = arith.constant 0 : index
    %c0_15 = arith.constant 0 : index
    %25 = vector.load %arg3[%c0_14, %c0_15] : memref<1x128xf32, #tpu.memory_space<vmem>>, vector<1x128xf32>
    %26 = vector.broadcast %25 : vector<1x128xf32> to vector<8x128xf32>
    %27 = arith.addf %24, %26 : vector<8x128xf32>
    %c0_16 = arith.constant 0 : index
    %c0_17 = arith.constant 0 : index
    %28 = vector.load %arg6[%c0_16, %c0_17] : memref<8x128xf32, #tpu.memory_space<vmem>>, vector<8x128xf32>
    tpu.vector_store %arg6[%c0_16, %c0_17], %27 {strides = array<i32>} : memref<8x128xf32, #tpu.memory_space<vmem>>, vector<8x128xf32>,
    return
  }
  func.func @transform_0(%arg0: i32) -> (i32, i32) {
    %c0_i32 = arith.constant 0 : i32
    %c0_i32_0 = arith.constant 0 : i32
    return %arg0, %c0_i32 : i32, i32
  }
  func.func @transform_1(%arg0: i32) -> (i32, i32) {
    %c0_i32 = arith.constant 0 : i32
    %c0_i32_0 = arith.constant 0 : i32
    %c0_i32_1 = arith.constant 0 : i32
    return %c0_i32, %c0_i32_0 : i32, i32
  }
  func.func @transform_2(%arg0: i32) -> (i32, i32) {
    %c0_i32 = arith.constant 0 : i32
    %c0_i32_0 = arith.constant 0 : i32
    %c0_i32_1 = arith.constant 0 : i32
    return %c0_i32, %c0_i32_0 : i32, i32
  }
  func.func @transform_3(%arg0: i32) -> (i32, i32) {
    %c0_i32 = arith.constant 0 : i32
    %c0_i32_0 = arith.constant 0 : i32
    %c0_i32_1 = arith.constant 0 : i32
    return %c0_i32, %c0_i32_0 : i32, i32
  }
  func.func @transform_4(%arg0: i32) -> (i32, i32) {
    %c0_i32 = arith.constant 0 : i32
    %c0_i32_0 = arith.constant 0 : i32
    %c0_i32_1 = arith.constant 0 : i32
    return %c0_i32, %c0_i32_0 : i32, i32
  }
  func.func @transform_5(%arg0: i32) -> (i32, i32) {
    %c0_i32 = arith.constant 0 : i32
    %c0_i32_0 = arith.constant 0 : i32
    return %arg0, %c0_i32 : i32, i32
  }
}

</mosaic_0001>

<llo_original>
// kernel: tpu_custom_call.1
$region0: #{tpu_custom_call.1}
  #allocation0 [shape = 'u32[]', space=smem, size = 0x4, offset = 0x4, fixed_abs, tag = 'smem constant byte address 0x4 - core index']
  #allocation1 [shape = 'u32[144,128]{1,0:T(1,128)}', space=vmem, size = 0x12000, scoped, tag = 'internal scratch']
  %s0 = inlined_call_operand.vmem [shape: f32[8,128], index: 0, kind: input, shape index: {}]
  %s1 = inlined_call_operand.vmem [shape: f32[1,128], index: 1, kind: input, shape index: {}]
  %s2 = inlined_call_operand.vmem [shape: f32[1,128], index: 2, kind: input, shape index: {}]
  %s3 = inlined_call_operand.vmem [shape: f32[128,8], index: 3, kind: input, shape index: {}]
  %s4 = inlined_call_operand.vmem [shape: f32[8,128], index: 4, kind: input, shape index: {}]
  %s5 = inlined_call_operand.hbm [shape: f32[8,128], index: 5, kind: output, shape index: {}]
  %s6 = sld [smem:[#allocation0]]
  $region30: #{tpu_custom_call.1} parent=0
    _
  %s8 = ssub.s32 1, %s6
  %s9 = scalar_select 0, %s8, %s6
  $region1: #{tpu_custom_call.1} parent=0
    #allocation2 [shape = 'u8[4096]{0}', space=vmem, size = 0x1000, scoped, tag = 'output window, operand 0, single buffered']
    #allocation3 [shape = 's32[1]{0}', space=sflag, size = 0x4, scoped, tag = 'scoped memory for tpu_custom_call.1']
    %10 = vsyncpa [#allocation3], 0
    // Predicated region
    $region2: #{tpu_custom_call.1} parent=1 // pred_check
      _
    $region3: #{tpu_custom_call.1} parent=1 // pred_check_branch
      %12 = sbr.rel (0) target = $region5
    $region4: #{tpu_custom_call.1} parent=1 // pred_region
      _
    $region5: #{tpu_custom_call.1} parent=1 // pred_fallthru
      _
    // Predicated region
    $region6: #{tpu_custom_call.1} parent=1 // pred_check
      _
    $region7: #{tpu_custom_call.1} parent=1 // pred_check_branch
      %14 = sbr.rel (0) target = $region9
    $region8: #{tpu_custom_call.1} parent=1 // pred_region
      _
    $region9: #{tpu_custom_call.1} parent=1 // pred_fallthru
      _
    // Predicated region
    $region10: #{tpu_custom_call.1} parent=1 // pred_check
      _
    $region11: #{tpu_custom_call.1} parent=1 // pred_check_branch
      %16 = sbr.rel (0) target = $region13
    $region12: #{tpu_custom_call.1} parent=1 // pred_region
      _
    $region13: #{tpu_custom_call.1} parent=1 // pred_fallthru
      _
    // Predicated region
    $region14: #{tpu_custom_call.1} parent=1 // pred_check
      _
    $region15: #{tpu_custom_call.1} parent=1 // pred_check_branch
      %18 = sbr.rel (0) target = $region17
    $region16: #{tpu_custom_call.1} parent=1 // pred_region
      _
    $region17: #{tpu_custom_call.1} parent=1 // pred_fallthru
      _
    // Predicated region
    $region18: #{tpu_custom_call.1} parent=1 // pred_check
      _
    $region19: #{tpu_custom_call.1} parent=1 // pred_check_branch
      %20 = sbr.rel (0) target = $region21
    $region20: #{tpu_custom_call.1} parent=1 // pred_region
      _
    $region21: #{tpu_custom_call.1} parent=1 // pred_fallthru
      _
    %v21 = vld [vmem:[%s0] sm:$0xff]
    %v22 = vld [vmem:[%s3] sm:$0xff]
    %v23 = vld [vmem:[%s3 + $0x8] sm:$0xff]
    %v24 = vld [vmem:[%s3 + $0x10] sm:$0xff]
    %v25 = vld [vmem:[%s3 + $0x18] sm:$0xff]
    %v26 = vld [vmem:[%s3 + $0x20] sm:$0xff]
    %v27 = vld [vmem:[%s3 + $0x28] sm:$0xff]
    %v28 = vld [vmem:[%s3 + $0x30] sm:$0xff]
    %v29 = vld [vmem:[%s3 + $0x38] sm:$0xff]
    %v30 = vld [vmem:[%s3 + $0x40] sm:$0xff]
    %v31 = vld [vmem:[%s3 + $0x48] sm:$0xff]
    %v32 = vld [vmem:[%s3 + $0x50] sm:$0xff]
    %v33 = vld [vmem:[%s3 + $0x58] sm:$0xff]
    %v34 = vld [vmem:[%s3 + $0x60] sm:$0xff]
    %v35 = vld [vmem:[%s3 + $0x68] sm:$0xff]
    %v36 = vld [vmem:[%s3 + $0x70] sm:$0xff]
    %v37 = vld [vmem:[%s3 + $0x78] sm:$0xff]
    %v38 = vld [vmem:[%s4] sm:$0xff]
    %39 = vmatprep.subr.mxu0 0.0
    %40 = vmatpush1.msra.mxu0 %v22
    %41 = vmatprep.subr.mxu0 0.0
    %42 = vmatpush1.msra.mxu0 %v23
    %43 = vmatprep.subr.mxu0 0.0
    %44 = vmatpush1.msra.mxu0 %v24
    %45 = vmatprep.subr.mxu0 0.0
    %46 = vmatpush1.msra.mxu0 %v25
    %47 = vmatprep.subr.mxu0 0.0
    %48 = vmatpush1.msra.mxu0 %v26
    %49 = vmatprep.subr.mxu0 0.0
    %50 = vmatpush1.msra.mxu0 %v27
    %51 = vmatprep.subr.mxu0 0.0
    %52 = vmatpush1.msra.mxu0 %v28
    %53 = vmatprep.subr.mxu0 0.0
    %54 = vmatpush1.msra.mxu0 %v29
    %55 = vmatprep.subr.mxu0 0.0
    %56 = vmatpush1.msra.mxu0 %v30
    %57 = vmatprep.subr.mxu0 0.0
    %58 = vmatpush1.msra.mxu0 %v31
    %59 = vmatprep.subr.mxu0 0.0
    %60 = vmatpush1.msra.mxu0 %v32
    %61 = vmatprep.subr.mxu0 0.0
    %62 = vmatpush1.msra.mxu0 %v33
    %63 = vmatprep.subr.mxu0 0.0
    %64 = vmatpush1.msra.mxu0 %v34
    %65 = vmatprep.subr.mxu0 0.0
    %66 = vmatpush1.msra.mxu0 %v35
    %67 = vmatprep.subr.mxu0 0.0
    %68 = vmatpush1.msra.mxu0 %v36
    %69 = vmatprep.subr.mxu0 0.0
    %70 = vmatpush1.msra.mxu0 %v37
    %71 = vmatprep.subr.mxu0 0.0
    %72 = vmatpush1.msra.mxu0 0.0
    %73 = vmatprep.subr.mxu0 0.0
    %74 = vmatpush1.msra.mxu0 0.0
    %75 = vmatprep.subr.mxu0 0.0
    %76 = vmatpush1.msra.mxu0 0.0
    %77 = vmatprep.subr.mxu0 0.0
    %78 = vmatpush1.msra.mxu0 0.0
    %79 = vmatprep.subr.mxu0 0.0
    %80 = vmatpush1.msra.mxu0 0.0
    %81 = vmatprep.subr.mxu0 0.0
    %82 = vmatpush1.msra.mxu0 0.0
    %83 = vmatprep.subr.mxu0 0.0
    %84 = vmatpush1.msra.mxu0 0.0
    %85 = vmatprep.subr.mxu0 0.0
    %86 = vmatpush1.msra.mxu0 0.0
    %87 = vmatprep.subr.mxu0 0.0
    %88 = vmatpush1.msra.mxu0 0.0
    %89 = vmatprep.subr.mxu0 0.0
    %90 = vmatpush1.msra.mxu0 0.0
    %91 = vmatprep.subr.mxu0 0.0
    %92 = vmatpush1.msra.mxu0 0.0
    %93 = vmatprep.subr.mxu0 0.0
    %94 = vmatpush1.msra.mxu0 0.0
    %95 = vmatprep.subr.mxu0 0.0
    %96 = vmatpush1.msra.mxu0 0.0
    %97 = vmatprep.subr.mxu0 0.0
    %98 = vmatpush1.msra.mxu0 0.0
    %99 = vmatprep.subr.mxu0 0.0
    %100 = vmatpush1.msra.mxu0 0.0
    %101 = vmatprep.subr.mxu0 0.0
    %102 = vmatpush1.msra.mxu0 0.0
    %103 = vmatprep.mubr.f32.mxu0 0.0
    %104 = vmatmul.mubr.f32.gmra.mrb[0].mxu0 %v21
    %v105 = vpop.f32.mrb[0].mxu0
    %v106 = vadd.f32 0.0, %v105
    %v107 = vpop.f32.mrb[0].mxu0
    %108 = vdwg.mxu0
    %v109 = vmul.f32 %v21, %v21
    %110 = vmatprep.subr.mxu0 0.0
    %111 = vmatpush1.msra.mxu0 %v22
    %112 = vmatprep.subr.mxu0 0.0
    %113 = vmatpush1.msra.mxu0 %v23
    %114 = vmatprep.subr.mxu0 0.0
    %115 = vmatpush1.msra.mxu0 %v24
    %116 = vmatprep.subr.mxu0 0.0
    %117 = vmatpush1.msra.mxu0 %v25
    %118 = vmatprep.subr.mxu0 0.0
    %119 = vmatpush1.msra.mxu0 %v26
    %120 = vmatprep.subr.mxu0 0.0
    %121 = vmatpush1.msra.mxu0 %v27
    %122 = vmatprep.subr.mxu0 0.0
    %123 = vmatpush1.msra.mxu0 %v28
    %124 = vmatprep.subr.mxu0 0.0
    %125 = vmatpush1.msra.mxu0 %v29
    %126 = vmatprep.subr.mxu0 0.0
    %127 = vmatpush1.msra.mxu0 %v30
    %128 = vmatprep.subr.mxu0 0.0
    %129 = vmatpush1.msra.mxu0 %v31
    %130 = vmatprep.subr.mxu0 0.0
    %131 = vmatpush1.msra.mxu0 %v32
    %132 = vmatprep.subr.mxu0 0.0
    %133 = vmatpush1.msra.mxu0 %v33
    %134 = vmatprep.subr.mxu0 0.0
    %135 = vmatpush1.msra.mxu0 %v34
    %136 = vmatprep.subr.mxu0 0.0
    %137 = vmatpush1.msra.mxu0 %v35
    %138 = vmatprep.subr.mxu0 0.0
    %139 = vmatpush1.msra.mxu0 %v36
    %140 = vmatprep.subr.mxu0 0.0
    %141 = vmatpush1.msra.mxu0 %v37
    %142 = vmatprep.subr.mxu0 0.0
    %143 = vmatpush1.msra.mxu0 0.0
    %144 = vmatprep.subr.mxu0 0.0
    %145 = vmatpush1.msra.mxu0 0.0
    %146 = vmatprep.subr.mxu0 0.0
    %147 = vmatpush1.msra.mxu0 0.0
    %148 = vmatprep.subr.mxu0 0.0
    %149 = vmatpush1.msra.mxu0 0.0
    %150 = vmatprep.subr.mxu0 0.0
    %151 = vmatpush1.msra.mxu0 0.0
    %152 = vmatprep.subr.mxu0 0.0
    %153 = vmatpush1.msra.mxu0 0.0
    %154 = vmatprep.subr.mxu0 0.0
    %155 = vmatpush1.msra.mxu0 0.0
    %156 = vmatprep.subr.mxu0 0.0
    %157 = vmatpush1.msra.mxu0 0.0
    %158 = vmatprep.subr.mxu0 0.0
    %159 = vmatpush1.msra.mxu0 0.0
    %160 = vmatprep.subr.mxu0 0.0
    %161 = vmatpush1.msra.mxu0 0.0
    %162 = vmatprep.subr.mxu0 0.0
    %163 = vmatpush1.msra.mxu0 0.0
    %164 = vmatprep.subr.mxu0 0.0
    %165 = vmatpush1.msra.mxu0 0.0
    %166 = vmatprep.subr.mxu0 0.0
    %167 = vmatpush1.msra.mxu0 0.0
    %168 = vmatprep.subr.mxu0 0.0
    %169 = vmatpush1.msra.mxu0 0.0
    %170 = vmatprep.subr.mxu0 0.0
    %171 = vmatpush1.msra.mxu0 0.0
    %172 = vmatprep.subr.mxu0 0.0
    %173 = vmatpush1.msra.mxu0 0.0
    %174 = vmatprep.mubr.f32.mxu0 0.0
    %175 = vmatmul.mubr.f32.gmra.mrb[0].mxu0 %v109
    %v176 = vpop.f32.mrb[0].mxu0
    %v177 = vadd.f32 0.0, %v176
    %v178 = vpop.f32.mrb[0].mxu0
    %179 = vdwg.mxu0
    %v180 = vmul.f32 %v106, 0.03125
    %v181 = vmul.f32 %v106, %v180
    %v182 = vsub.f32 %v177, %v181
    %v183 = vmul.f32 %v182, 0.032258064
    %v184 = vmax.f32 %v183, 0.0
    %v185 = vrsqrt.pop %v184
    %v186 = vmul.f32 %v184, %v185
    %vm187 = vcmp.eq.f32.partialorder %v184, inf
    %v188 = vsel %vm187, %v184, %v186
    %vm189 = vcmp.eq.f32.partialorder %v184, 0.0
    %v190 = vand.u32 %v184, 2147483648
    %v191 = vsel %vm189, %v190, %v188
    %v192 = vadd.f32 %v191, 1e-06
    %v193 = vrcp.pop %v192
    %vm194 = vcmask 64512
    %v196 = vsel %vm194, %v180, 0
    %198 = vmatprep.subr.mxu0 0.0
    %199 = vmatpush1.msra.mxu0 %v38
    %200 = vmatprep.subr.mxu0 0.0
    %201 = vmatpush1.msra.mxu0 0.0
    %202 = vmatprep.subr.mxu0 0.0
    %203 = vmatpush1.msra.mxu0 0.0
    %204 = vmatprep.subr.mxu0 0.0
    %205 = vmatpush1.msra.mxu0 0.0
    %206 = vmatprep.subr.mxu0 0.0
    %207 = vmatpush1.msra.mxu0 0.0
    %208 = vmatprep.subr.mxu0 0.0
    %209 = vmatpush1.msra.mxu0 0.0
    %210 = vmatprep.subr.mxu0 0.0
    %211 = vmatpush1.msra.mxu0 0.0
    %212 = vmatprep.subr.mxu0 0.0
    %213 = vmatpush1.msra.mxu0 0.0
    %214 = vmatprep.subr.mxu0 0.0
    %215 = vmatpush1.msra.mxu0 0.0
    %216 = vmatprep.subr.mxu0 0.0
    %217 = vmatpush1.msra.mxu0 0.0
    %218 = vmatprep.subr.mxu0 0.0
    %219 = vmatpush1.msra.mxu0 0.0
    %220 = vmatprep.subr.mxu0 0.0
    %221 = vmatpush1.msra.mxu0 0.0
    %222 = vmatprep.subr.mxu0 0.0
    %223 = vmatpush1.msra.mxu0 0.0
    %224 = vmatprep.subr.mxu0 0.0
    %225 = vmatpush1.msra.mxu0 0.0
    %226 = vmatprep.subr.mxu0 0.0
    %227 = vmatpush1.msra.mxu0 0.0
    %228 = vmatprep.subr.mxu0 0.0
    %229 = vmatpush1.msra.mxu0 0.0
    %230 = vmatprep.subr.mxu0 0.0
    %231 = vmatpush1.msra.mxu0 0.0
    %232 = vmatprep.subr.mxu0 0.0
    %233 = vmatpush1.msra.mxu0 0.0
    %234 = vmatprep.subr.mxu0 0.0
    %235 = vmatpush1.msra.mxu0 0.0
    %236 = vmatprep.subr.mxu0 0.0
    %237 = vmatpush1.msra.mxu0 0.0
    %238 = vmatprep.subr.mxu0 0.0
    %239 = vmatpush1.msra.mxu0 0.0
    %240 = vmatprep.subr.mxu0 0.0
    %241 = vmatpush1.msra.mxu0 0.0
    %242 = vmatprep.subr.mxu0 0.0
    %243 = vmatpush1.msra.mxu0 0.0
    %244 = vmatprep.subr.mxu0 0.0
    %245 = vmatpush1.msra.mxu0 0.0
    %246 = vmatprep.subr.mxu0 0.0
    %247 = vmatpush1.msra.mxu0 0.0
    %248 = vmatprep.subr.mxu0 0.0
    %249 = vmatpush1.msra.mxu0 0.0
    %250 = vmatprep.subr.mxu0 0.0
    %251 = vmatpush1.msra.mxu0 0.0
    %252 = vmatprep.subr.mxu0 0.0
    %253 = vmatpush1.msra.mxu0 0.0
    %254 = vmatprep.subr.mxu0 0.0
    %255 = vmatpush1.msra.mxu0 0.0
    %256 = vmatprep.subr.mxu0 0.0
    %257 = vmatpush1.msra.mxu0 0.0
    %258 = vmatprep.subr.mxu0 0.0
    %259 = vmatpush1.msra.mxu0 0.0
    %260 = vmatprep.subr.mxu0 0.0
    %261 = vmatpush1.msra.mxu0 0.0
    %262 = vmatprep.mubr.f32.mxu0 0.0
    %263 = vmatmul.mubr.f32.gmra.mrb[0].mxu0 %v196
    %v264 = vpop.f32.mrb[0].mxu0
    %v265 = vadd.f32 0.0, %v264
    %v266 = vpop.f32.mrb[0].mxu0
    %267 = vdwg.mxu0
    %v269 = vsel %vm194, %v193, 0
    %271 = vmatprep.subr.mxu0 0.0
    %272 = vmatpush1.msra.mxu0 %v38
    %273 = vmatprep.subr.mxu0 0.0
    %274 = vmatpush1.msra.mxu0 0.0
    %275 = vmatprep.subr.mxu0 0.0
    %276 = vmatpush1.msra.mxu0 0.0
    %277 = vmatprep.subr.mxu0 0.0
    %278 = vmatpush1.msra.mxu0 0.0
    %279 = vmatprep.subr.mxu0 0.0
    %280 = vmatpush1.msra.mxu0 0.0
    %281 = vmatprep.subr.mxu0 0.0
    %282 = vmatpush1.msra.mxu0 0.0
    %283 = vmatprep.subr.mxu0 0.0
    %284 = vmatpush1.msra.mxu0 0.0
    %285 = vmatprep.subr.mxu0 0.0
    %286 = vmatpush1.msra.mxu0 0.0
    %287 = vmatprep.subr.mxu0 0.0
    %288 = vmatpush1.msra.mxu0 0.0
    %289 = vmatprep.subr.mxu0 0.0
    %290 = vmatpush1.msra.mxu0 0.0
    %291 = vmatprep.subr.mxu0 0.0
    %292 = vmatpush1.msra.mxu0 0.0
    %293 = vmatprep.subr.mxu0 0.0
    %294 = vmatpush1.msra.mxu0 0.0
    %295 = vmatprep.subr.mxu0 0.0
    %296 = vmatpush1.msra.mxu0 0.0
    %297 = vmatprep.subr.mxu0 0.0
    %298 = vmatpush1.msra.mxu0 0.0
    %299 = vmatprep.subr.mxu0 0.0
    %300 = vmatpush1.msra.mxu0 0.0
    %301 = vmatprep.subr.mxu0 0.0
    %302 = vmatpush1.msra.mxu0 0.0
    %303 = vmatprep.subr.mxu0 0.0
    %304 = vmatpush1.msra.mxu0 0.0
    %305 = vmatprep.subr.mxu0 0.0
    %306 = vmatpush1.msra.mxu0 0.0
    %307 = vmatprep.subr.mxu0 0.0
    %308 = vmatpush1.msra.mxu0 0.0
    %309 = vmatprep.subr.mxu0 0.0
    %310 = vmatpush1.msra.mxu0 0.0
    %311 = vmatprep.subr.mxu0 0.0
    %312 = vmatpush1.msra.mxu0 0.0
    %313 = vmatprep.subr.mxu0 0.0
    %314 = vmatpush1.msra.mxu0 0.0
    %315 = vmatprep.subr.mxu0 0.0
    %316 = vmatpush1.msra.mxu0 0.0
    %317 = vmatprep.subr.mxu0 0.0
    %318 = vmatpush1.msra.mxu0 0.0
    %319 = vmatprep.subr.mxu0 0.0
    %320 = vmatpush1.msra.mxu0 0.0
    %321 = vmatprep.subr.mxu0 0.0
    %322 = vmatpush1.msra.mxu0 0.0
    %323 = vmatprep.subr.mxu0 0.0
    %324 = vmatpush1.msra.mxu0 0.0
    %325 = vmatprep.subr.mxu0 0.0
    %326 = vmatpush1.msra.mxu0 0.0
    %327 = vmatprep.subr.mxu0 0.0
    %328 = vmatpush1.msra.mxu0 0.0
    %329 = vmatprep.subr.mxu0 0.0
    %330 = vmatpush1.msra.mxu0 0.0
    %331 = vmatprep.subr.mxu0 0.0
    %332 = vmatpush1.msra.mxu0 0.0
    %333 = vmatprep.subr.mxu0 0.0
    %334 = vmatpush1.msra.mxu0 0.0
    %335 = vmatprep.mubr.f32.mxu0 0.0
    %336 = vmatmul.mubr.f32.gmra.mrb[0].mxu0 %v269
    %v337 = vpop.f32.mrb[0].mxu0
    %v338 = vadd.f32 0.0, %v337
    %v339 = vpop.f32.mrb[0].mxu0
    %340 = vdwg.mxu0
    %v341 = vld [vmem:[%s1] sm:$0x1]
    %v342 = vsub.f32 %v21, %v265
    %v343 = vmul.f32 %v342, %v338
    %v345 = vlaneseq
    %v346 = vshrl.u32 %v345, 7
    %v347 = vsub.s32 0, %v346
    %v348 = vrot.slane %v341, %v347
    %v350 = vmul.f32 %v348, %v343
    %v351 = vld [vmem:[%s2] sm:$0x1]
    %v353 = vlaneseq
    %v354 = vshrl.u32 %v353, 7
    %v355 = vsub.s32 0, %v354
    %v356 = vrot.slane %v351, %v355
    %v358 = vadd.f32 %v350, %v356
    %359 = vst [vmem:[#allocation2] sm:$0xff] %v358
    // Predicated region
    $region22: #{tpu_custom_call.1} parent=1 // pred_check
      _
    $region23: #{tpu_custom_call.1} parent=1 // pred_check_branch
      %361 = sbr.rel (0) target = $region25
    $region24: #{tpu_custom_call.1} parent=1 // pred_region
      %s363 = ssub.s32 128, 128
      %364 = vsyncadd [#allocation3], %s363
      %s366 = sshll.u32 [#allocation2], 4
      %s367 = int_to_ptr.vmem [resolvable:$true] %s366
      %369 = dma.vmem_to_hbm [thread:$0]  %s367, 128, %s5, [#allocation3]
    $region25: #{tpu_custom_call.1} parent=1 // pred_fallthru
      _
    // Predicated region
    $region26: #{tpu_custom_call.1} parent=1 // pred_check
      _
    $region27: #{tpu_custom_call.1} parent=1 // pred_check_branch
      %371 = sbr.rel (0) target = $region29
    $region28: #{tpu_custom_call.1} parent=1 // pred_region
      %372 = dma.done [#allocation3], 128
    $region29: #{tpu_custom_call.1} parent=1 // pred_fallthru
      _
    %373 = vsyncpa [#allocation3], 1

</llo_original>
